<compile_context>
chip_gen: v7x
topology: tpu7x:2x2x1
jax: 0.10.0
libtpu: 0.0.40
codegen_flags: <defaults>
</compile_context>

<pallas_src>
import functools

import jax
import jax.numpy as jnp
from jax.experimental import pallas as pl
from jax.experimental.pallas import tpu as pltpu


def _gap_kernel(x_ref, o_ref, acc_ref, *, s_total, s_block, inv_hw, needs_mask):
    """One (batch, channel-tile, spatial-chunk) grid step.

    x_ref:   (1, C_t, S_t)  input chunk in VMEM (spatial on the 128-lane axis)
    o_ref:   (1, 1, C_t)    output block (channels lane-dense)
    acc_ref: (1, C_t)       fp32 running sum, resident across the spatial axis
    """
    k = pl.program_id(2)

    @pl.when(k == 0)
    def _init():
        acc_ref[...] = jnp.zeros_like(acc_ref)

    x = x_ref[...]
    if needs_mask:
        # Last spatial chunk is padded past H*W; zero the out-of-range lanes so
        # padding never contaminates the running sum.
        lane = jax.lax.broadcasted_iota(jnp.int32, x.shape, dimension=2)
        x = jnp.where(k * s_block + lane < s_total, x, jnp.zeros_like(x))

    # Per-chunk partial sum, accumulated in fp32.
    acc_ref[...] += jnp.sum(x, axis=-1, dtype=jnp.float32)

    @pl.when(k == pl.num_programs(2) - 1)
    def _finalize():
        mean = acc_ref[...] * inv_hw                         # (1, C_t) fp32
        o_ref[...] = mean[:, None, :].astype(o_ref.dtype)    # (1, 1, C_t)


def global_avg_pool2d(x: jax.Array, *, c_block_cap: int = 512,
                      s_block_cap: int = 2048) -> jax.Array:
    """Global average pool over spatial dims of an NCHW tensor -> (N, C)."""
    assert x.ndim == 4, "expected NCHW input"
    assert c_block_cap % 128 == 0 and s_block_cap % 128 == 0
    n, c, h, w = x.shape
    s = h * w
    # Free reshape: spatial becomes one long lane-dense axis.
    x3 = x.reshape(n, c, s)

    # Spatial chunking: whole extent if it fits, else multiple-of-128 chunks.
    s_block = s if s <= s_block_cap else s_block_cap
    ns = pl.cdiv(s, s_block)
    needs_mask = (s % s_block) != 0

    # Channel tiling: full C when small; otherwise a multiple-of-128 tile, grown
    # when the spatial extent is small so each DMA stays near ~4 MiB (amortizes
    # the ~0.35 us per-grid-step overhead) while still double-buffering within
    # every generation's scoped VMEM (v7x included).
    if c <= c_block_cap:
        c_block = c
    else:
        target_elems = c_block_cap * s_block_cap  # ~4 MiB fp32 / ~2 MiB bf16 tile
        c_block = max(c_block_cap, (target_elems // s_block) // 128 * 128)
        if c_block >= c:
            c_block = c
    nc = pl.cdiv(c, c_block)

    kernel = functools.partial(
        _gap_kernel,
        s_total=s, s_block=s_block, inv_hw=1.0 / float(s), needs_mask=needs_mask)

    out3 = pl.pallas_call(
        kernel,
        out_shape=jax.ShapeDtypeStruct((n, 1, c), x.dtype),
        grid=(n, nc, ns),
        in_specs=[pl.BlockSpec((1, c_block, s_block), lambda i, j, k: (i, j, k))],
        out_specs=pl.BlockSpec((1, 1, c_block), lambda i, j, k: (i, 0, j)),
        scratch_shapes=[pltpu.VMEM((1, c_block), jnp.float32)],
        compiler_params=pltpu.CompilerParams(
            dimension_semantics=("parallel", "parallel", "arbitrary")),
    )(x3)
    return out3.reshape(n, c)


if __name__ == "__main__":
    key = jax.random.PRNGKey(0)
    k1, k2, k3 = jax.random.split(key, 3)

    # Small NCHW input consistent with the module.
    x = jax.random.normal(k1, (2, 4, 16, 16), dtype=jnp.float32)
    out = jax.block_until_ready(global_avg_pool2d(x))
    ref = jnp.mean(x, axis=(2, 3))
    assert out.shape == (2, 4)
    assert jnp.allclose(out, ref, atol=1e-5, rtol=1e-5)

    # Exercise the tiled path: uneven channel tiles and a masked spatial chunk.
    x2 = jax.random.normal(k2, (2, 130, 10, 15), dtype=jnp.float32)
    out2 = jax.block_until_ready(
        global_avg_pool2d(x2, c_block_cap=128, s_block_cap=128))
    ref2 = jnp.mean(x2, axis=(2, 3))
    assert out2.shape == (2, 130)
    assert jnp.allclose(out2, ref2, atol=1e-5, rtol=1e-5)

    # bf16 input: fp32 accumulation, single rounding to bf16 at the end.
    x3 = jax.random.normal(k3, (2, 4, 16, 16), dtype=jnp.bfloat16)
    out3 = jax.block_until_ready(global_avg_pool2d(x3))
    ref3 = jnp.mean(x3.astype(jnp.float32), axis=(2, 3))
    assert out3.dtype == jnp.bfloat16
    assert jnp.allclose(out3.astype(jnp.float32), ref3, atol=1e-2, rtol=2e-2)

    print("KERNEL_OK")
</pallas_src>

<mosaic_0001>
module attributes {stable_mosaic.version = 11 : i64} {
  func.func @_gap_kernel(%arg0: i32, %arg1: i32, %arg2: i32, %arg3: memref<1x4x256xf32, #tpu.memory_space<vmem>>, %arg4: memref<1x1x4xf32, #tpu.memory_space<vmem>>, %arg5: memref<1x4xf32, #tpu.memory_space<vmem>>) attributes {dimension_semantics = [#tpu.dimension_semantics<parallel>, #tpu.dimension_semantics<parallel>, #tpu.dimension_semantics<arbitrary>], iteration_bounds = array<i64: 2, 1, 1>, scalar_prefetch = 0 : i64, scratch_operands = 1 : i64, tpu.core_type = #tpu.core_type<tc>, window_params = [{transform_indices = @transform_0, window_bounds = array<i64: 1, 4, 256>}, {transform_indices = @transform_1, window_bounds = array<i64: 1, 1, 4>}]} {
    %c0_i32 = arith.constant 0 : i32
    %0 = arith.cmpi eq, %arg2, %c0_i32 : i32
    %1 = arith.extui %0 : i1 to i32
    %c0_i32_0 = arith.constant 0 : i32
    %2 = arith.cmpi ne, %1, %c0_i32_0 : i32
    scf.if %2 {
      %cst_9 = arith.constant 0.000000e+00 : f32
      %11 = vector.broadcast %cst_9 : f32 to vector<1x4xf32>
      %c0_10 = arith.constant 0 : index
      %c0_11 = arith.constant 0 : index
      %12 = vector.load %arg5[%c0_10, %c0_11] : memref<1x4xf32, #tpu.memory_space<vmem>>, vector<1x4xf32>
      tpu.vector_store %arg5[%c0_10, %c0_11], %11 {strides = array<i32>} : memref<1x4xf32, #tpu.memory_space<vmem>>, vector<1x4xf32>,
    } else {
    }
    %c0 = arith.constant 0 : index
    %c0_1 = arith.constant 0 : index
    %c0_2 = arith.constant 0 : index
    %3 = vector.load %arg3[%c0, %c0_1, %c0_2] : memref<1x4x256xf32, #tpu.memory_space<vmem>>, vector<1x4x256xf32>
    %c0_3 = arith.constant 0 : index
    %c0_4 = arith.constant 0 : index
    %4 = vector.load %arg5[%c0_3, %c0_4] : memref<1x4xf32, #tpu.memory_space<vmem>>, vector<1x4xf32>
    %cst = arith.constant dense<0.000000e+00> : vector<1x4xf32>
    %5 = vector.multi_reduction <add>, %3, %cst [2] : vector<1x4x256xf32> to vector<1x4xf32>
    %6 = arith.addf %4, %5 : vector<1x4xf32>
    %c0_5 = arith.constant 0 : index
    %c0_6 = arith.constant 0 : index
    %7 = vector.load %arg5[%c0_5, %c0_6] : memref<1x4xf32, #tpu.memory_space<vmem>>, vector<1x4xf32>
    tpu.vector_store %arg5[%c0_5, %c0_6], %6 {strides = array<i32>} : memref<1x4xf32, #tpu.memory_space<vmem>>, vector<1x4xf32>,
    %c0_i32_7 = arith.constant 0 : i32
    %8 = arith.cmpi eq, %arg2, %c0_i32_7 : i32
    %9 = arith.extui %8 : i1 to i32
    %c0_i32_8 = arith.constant 0 : i32
    %10 = arith.cmpi ne, %9, %c0_i32_8 : i32
    scf.if %10 {
      %c0_9 = arith.constant 0 : index
      %c0_10 = arith.constant 0 : index
      %11 = vector.load %arg5[%c0_9, %c0_10] : memref<1x4xf32, #tpu.memory_space<vmem>>, vector<1x4xf32>
      %cst_11 = arith.constant 3.906250e-03 : f32
      %12 = vector.broadcast %cst_11 : f32 to vector<1x4xf32>
      %13 = arith.mulf %11, %12 : vector<1x4xf32>
      %14 = vector.shape_cast %13 : vector<1x4xf32> to vector<1x1x4xf32>
      %c0_12 = arith.constant 0 : index
      %c0_13 = arith.constant 0 : index
      %c0_14 = arith.constant 0 : index
      %15 = vector.load %arg4[%c0_12, %c0_13, %c0_14] : memref<1x1x4xf32, #tpu.memory_space<vmem>>, vector<1x1x4xf32>
      tpu.vector_store %arg4[%c0_12, %c0_13, %c0_14], %14 {strides = array<i32>} : memref<1x1x4xf32, #tpu.memory_space<vmem>>, vector<1x1x4xf32>,
    } else {
    }
    return
  }
  func.func @transform_0(%arg0: i32, %arg1: i32, %arg2: i32) -> (i32, i32, i32) {
    %c0_i32 = arith.constant 0 : i32
    return %arg0, %arg1, %arg2 : i32, i32, i32
  }
  func.func @transform_1(%arg0: i32, %arg1: i32, %arg2: i32) -> (i32, i32, i32) {
    %c0_i32 = arith.constant 0 : i32
    %c0_i32_0 = arith.constant 0 : i32
    return %arg0, %c0_i32, %arg1 : i32, i32, i32
  }
}

</mosaic_0001>

<llo_original>
// kernel: tpu_custom_call.1
$region0: #{tpu_custom_call.1}
  #allocation0 [shape = 'u32[]', space=smem, size = 0x4, offset = 0x4, fixed_abs, tag = 'smem constant byte address 0x4 - core index']
  #allocation1 [shape = 'u32[144,128]{1,0:T(1,128)}', space=vmem, size = 0x12000, scoped, tag = 'internal scratch']
  #allocation2 [shape = 'f32[1,4]{1,0:T(1,128)}', space=vmem, size = 0x200, scoped, tag = 'scratch operand']
  %s0 = inlined_call_operand.hbm [shape: f32[2,4,256], index: 0, kind: input, shape index: {}]
  %s1 = inlined_call_operand.hbm [shape: f32[2,1,4], index: 1, kind: output, shape index: {}]
  %s2 = sld [smem:[#allocation0]]
  $region49: #{tpu_custom_call.1} parent=0
    _
  %s4 = ssub.s32 1, %s2
  %s5 = scalar_select 0, %s4, %s2
  $region1: #{tpu_custom_call.1} parent=0
    #allocation3 [shape = 'u8[8192]{0}', space=vmem, size = 0x2000, scoped, tag = 'input window, operand 0']
    #allocation4 [shape = 's32[2]{0}', space=sflag, size = 0x8, scoped, tag = 'scoped memory for tpu_custom_call.1']
    #allocation5 [shape = 's32[2]{0}', space=sflag, size = 0x8, scoped, tag = 'scoped memory for tpu_custom_call.1']
    #allocation6 [shape = 'u8[1024]{0}', space=vmem, size = 0x400, scoped, tag = 'output window, operand 0']
    %6 = vsyncpa [#allocation4], 0
    %s7 = scalar_lea.sflag [#allocation4], 1
    %8 = vsyncpa %s7, 0
    %9 = vsyncpa [#allocation5], 0
    %s10 = scalar_lea.sflag [#allocation5], 1
    %11 = vsyncpa %s10, 0
    loop: start=0, step=1, limit=4
    $region2: #{tpu_custom_call.1} parent=1 // loop_pre_header
      _
    $region3: #{tpu_custom_call.1} parent=1 // loop_header
      %s13 = sphi 0, %s17
      %p14 = scmp.ge.s32.totalorder %s13, 4
      %s20 = sphi 0, %s39
      %s21 = sphi 0, %s35
      %s22 = sphi 0, %s31
      %s23 = sphi 0, %s20
      %s24 = sphi 0, %s21
      %s25 = sphi 0, %s22
      %s26 = sphi 0, %s23
      %s27 = sphi 0, %s24
      %s28 = sphi 0, %s25
      %s46 = sphi 0, %s48
      %s49 = sphi 0, %s46
      %s50 = sphi 0, %s49
      %s66 = sphi 0, %s50
      %s74 = sphi 0, %s76
      %s77 = sphi 0, %s74
      %s78 = sphi 0, %s77
      %s94 = sphi 0, %s78
    $region4: #{tpu_custom_call.1} parent=1 // loop_header_branch
      %16 = sbr.rel (%p14) target = $region8
    $region5: #{tpu_custom_call.1} parent=1 // loop_body
      %s18 = ssub.s32 %s13, 1
      %s19 = ssub.s32 %s13, 2
      %s29 = sadd.s32 1, %s22
      %p30 = scmp.ge.s32.totalorder %s29, 1
      %s31 = scalar_select %p30, 0, %s29
      %s32 = sadd.s32 1, %s21
      %s33 = scalar_select %p30, %s32, %s21
      %p34 = scmp.ge.s32.totalorder %s33, 1
      %s35 = scalar_select %p34, 0, %s33
      %s36 = sadd.s32 1, %s20
      %s37 = scalar_select %p34, %s36, %s20
      %p38 = scmp.ge.s32.totalorder %s37, 2
      %s39 = scalar_select %p38, 0, %s37
      %s40 = ssub.s32 %s20, %s39
      %s41 = ssub.s32 %s21, %s35
      %s42 = sor.u32 %s40, %s41
      %s43 = ssub.s32 %s22, %s31
      %s44 = sor.u32 %s42, %s43
      %p45 = scmp.eq.s32.totalorder %s44, 0
      %s47 = sadd.s32 %s46, 1
      %s48 = scalar_select %p45, %s46, %s47
      %p51 = pneg %p45
      %p52 = scmp.eq.s32.totalorder %s13, 1
      %p53 = por %p51, %p52
      %p54 = scmp.ne.s32.totalorder %s46, %s49
      %p55 = scmp.eq.s32.totalorder %s13, 0
      %p56 = por %p54, %p55
      %p57 = scmp.ne.s32.totalorder %s46, %s49
      %p58 = scmp.eq.s32.totalorder %s18, 1
      %p59 = por %p57, %p58
      %p60 = scmp.ne.s32.totalorder %s49, %s50
      %p61 = scmp.eq.s32.totalorder %s18, 0
      %p62 = por %p60, %p61
      %p63 = scmp.ne.s32.totalorder %s49, %s50
      %p64 = scmp.eq.s32.totalorder %s19, 1
      %p65 = por %p63, %p64
      %p67 = scmp.ne.s32.totalorder %s50, %s66
      %p68 = scmp.eq.s32.totalorder %s19, 0
      %p69 = por %p67, %p68
      %s70 = ssub.s32 %s20, %s39
      %s71 = ssub.s32 %s21, %s35
      %s72 = sor.u32 %s70, %s71
      %p73 = scmp.eq.s32.totalorder %s72, 0
      %s75 = sadd.s32 %s74, 1
      %s76 = scalar_select %p73, %s74, %s75
      %p79 = pneg %p73
      %p80 = scmp.eq.s32.totalorder %s13, 1
      %p81 = por %p79, %p80
      %p82 = scmp.ne.s32.totalorder %s74, %s77
      %p83 = scmp.eq.s32.totalorder %s13, 0
      %p84 = por %p82, %p83
      %p85 = scmp.ne.s32.totalorder %s74, %s77
      %p86 = scmp.eq.s32.totalorder %s18, 1
      %p87 = por %p85, %p86
      %p88 = scmp.ne.s32.totalorder %s77, %s78
      %p89 = scmp.eq.s32.totalorder %s18, 0
      %p90 = por %p88, %p89
      %p91 = scmp.ne.s32.totalorder %s77, %s78
      %p92 = scmp.eq.s32.totalorder %s19, 1
      %p93 = por %p91, %p92
      %p95 = scmp.ne.s32.totalorder %s78, %s94
      %p96 = scmp.eq.s32.totalorder %s19, 0
      %p97 = por %p95, %p96
      %p98 = scmp.le.s32.totalorder 1, %s13
      %p99 = scmp.lt.s32.totalorder %s13, 3
      %p100 = pnand %p98, %p99
      %p101 = pneg %p100
      // Predicated region
      $region9: #{tpu_custom_call.1} parent=5 // pred_check
        _
      $region10: #{tpu_custom_call.1} parent=5 // pred_check_branch
        %103 = sbr.rel (%p100) target = $region12
      $region11: #{tpu_custom_call.1} parent=5 // pred_region
        %s104 = ssub.s32 %s13, 1
      $region12: #{tpu_custom_call.1} parent=5 // pred_fallthru
        _
      %p105 = scmp.lt.s32.totalorder %s13, 2
      // Predicated region
      $region13: #{tpu_custom_call.1} parent=5 // pred_check
        %p106 = pneg %p105
      $region14: #{tpu_custom_call.1} parent=5 // pred_check_branch
        %108 = sbr.rel (%p106) target = $region16
      $region15: #{tpu_custom_call.1} parent=5 // pred_region
        // Predicated region
        $region17: #{tpu_custom_call.1} parent=15 // pred_check
          %p109 = pneg %p56
        $region18: #{tpu_custom_call.1} parent=15 // pred_check_branch
          %111 = sbr.rel (%p109) target = $region20
        $region19: #{tpu_custom_call.1} parent=15 // pred_region
          %s112 = sand.u32 %s46, 1
          %s113 = scalar_lea.sflag [#allocation4], %s112
          %s114 = sand.u32 %s46, 1
          %s115 = smul.addr %s114, 8
          %s116 = scalar_lea.vmem [#allocation3], %s115
          %s117 = smul.u32 2, %s22
          %s119 = ssub.s32 128, 128
          %120 = vsyncadd %s113, %s119
          %s121 = smul.addr %s21, 2
          %s122 = sadd.s32 %s117, %s121
          %s123 = smul.addr %s20, 2
          %s124 = sadd.s32 %s122, %s123
          %s125 = smul.addr %s124, 64
          %s126 = scalar_lea.hbm %s0, %s125
          %s128 = sshll.u32 %s116, 4
          %s129 = int_to_ptr.vmem [resolvable:$true] %s128
          %131 = dma.hbm_to_vmem [thread:$0]  %s126, 128, %s129, %s113
        $region20: #{tpu_custom_call.1} parent=15 // pred_fallthru
          _
      $region16: #{tpu_custom_call.1} parent=5 // pred_fallthru
        _
      %p132 = scmp.le.s32.totalorder 1, %s13
      %p133 = scmp.lt.s32.totalorder %s13, 3
      %p134 = pnand %p132, %p133
      %p135 = pneg %p134
      // Predicated region
      $region21: #{tpu_custom_call.1} parent=5 // pred_check
        _
      $region22: #{tpu_custom_call.1} parent=5 // pred_check_branch
        %137 = sbr.rel (%p134) target = $region24
      $region23: #{tpu_custom_call.1} parent=5 // pred_region
        %s138 = ssub.s32 %s13, 1
        %s139 = sand.u32 %s49, 1
        %s140 = scalar_lea.sflag [#allocation4], %s139
        %s141 = sand.u32 %s49, 1
        %s142 = smul.addr %s141, 8
        %s143 = scalar_lea.vmem [#allocation3], %s142
        // Predicated region
        $region25: #{tpu_custom_call.1} parent=23 // pred_check
          %p144 = pneg %p62
        $region26: #{tpu_custom_call.1} parent=23 // pred_check_branch
          %146 = sbr.rel (%p144) target = $region28
        $region27: #{tpu_custom_call.1} parent=23 // pred_region
          %147 = dma.done %s140, 128
        $region28: #{tpu_custom_call.1} parent=23 // pred_fallthru
          _
        %s148 = sand.u32 %s49, 1
        %s149 = scalar_lea.sflag [#allocation4], %s148
        %s150 = sand.u32 %s49, 1
        %s151 = smul.addr %s150, 8
        %s152 = scalar_lea.vmem [#allocation3], %s151
        %p153 = pneg %p62
        %p154 = pneg %p59
        %p155 = pneg %p90
        %p156 = pneg %p87
        %s157 = sand.u32 %s77, 1
        %s158 = scalar_lea.sflag [#allocation5], %s157
        %s159 = sand.u32 %s77, 1
        %s160 = scalar_lea.vmem [#allocation6], %s159
        %s161 = smul.u32 2, %s25
        %p162 = scmp.eq.s32.totalorder %s25, 0
        // Predicated region
        $region29: #{tpu_custom_call.1} parent=23 // pred_check
          %p163 = pneg %p162
        $region30: #{tpu_custom_call.1} parent=23 // pred_check_branch
          %165 = sbr.rel (%p163) target = $region32
        $region31: #{tpu_custom_call.1} parent=23 // pred_region
          %vm166 = vcmask 24576
          %167 = vst.msk [vmem:[#allocation2] sm:$0x1] %vm166, 0.0
        $region32: #{tpu_custom_call.1} parent=23 // pred_fallthru
          _
        %v168 = vld [vmem:[%s143] sm:$0xff]
        %v169 = vld [vmem:[#allocation2] sm:$0x1]
        %v171 = vcombine.high %v168, %v168
        %vm173 = vcmask 1043456
        %v174 = vsel %vm173, %v168, 0.0
        %v175 = vsel %vm173, %v171, 0.0
        %v176 = vadd.f32 %v174, %v175
        %177 = vadd.xlane.f32.xlu0 %v176
        %v178 = vpop.xlane.xlu0 %177
        %v180 = vlaneseq
        %v181 = vshrl.u32 %v180, 7
        %v182 = vsub.s32 0, %v181
        %v183 = vrot.slane %v178, %v182
        %v184 = vlaneseq
        %v185 = vshrl.u32 %v184, 7
        %v186 = vsub.s32 1, %v185
        %v187 = vrot.slane %v178, %v186
        %v188 = vlaneseq
        %v189 = vshrl.u32 %v188, 7
        %v190 = vsub.s32 2, %v189
        %v191 = vrot.slane %v178, %v190
        %v192 = vlaneseq
        %v193 = vshrl.u32 %v192, 7
        %v194 = vsub.s32 3, %v193
        %v195 = vrot.slane %v178, %v194
        %v196 = vcombine.low %v183, %v187
        %v197 = vcombine.low %v191, %v195
        %v199 = vunpack.c.l.s4 1966171168
        %v200 = vunpack.c.0.s8 %v199
        %v201 = vlaneseq
        %v202 = vshrl.u32 %v201, 7
        %v203 = vsub.s32 %v200, %v202
        %v204 = vrot.slane %v196, %v203
        %v206 = vunpack.c.l.s4 1966171168
        %v207 = vunpack.c.0.s8 %v206
        %v208 = vlaneseq
        %v209 = vshrl.u32 %v208, 7
        %v210 = vsub.s32 %v207, %v209
        %v211 = vrot.slane %v197, %v210
        %v212 = vcombine.low %v204, %v211
        %v214 = vunpack.c.l.s4 1966171168
        %v215 = vunpack.c.0.s8 %v214
        %v216 = vlaneseq
        %v217 = vshrl.u32 %v216, 7
        %v218 = vsub.s32 %v215, %v217
        %v219 = vrot.slane %v212, %v218
        %220 = vset.pattern.permute.xlu0 0
        %221 = vperm.xlu0 %220, %v219
        %v222 = vpop.permute.xlu0 %221
        %v223 = vlaneseq
        %v224 = vand.u32 %v223, 127
        %v225 = vlaneseq
        %v226 = vshrl.u32 %v225, 7
        %v227 = vsub.s32 %v224, %v226
        %v228 = vrot.slane %v222, %v227
        %v230 = vunpack.c.l.s4 1966171168
        %v231 = vunpack.c.0.s8 %v230
        %v232 = vlaneseq
        %v233 = vshrl.u32 %v232, 7
        %v234 = vsub.s32 %v231, %v233
        %v235 = vrot.slane %v228, %v234
        %v237 = vunpack.c.l.s4 1966171168
        %v238 = vunpack.c.0.s8 %v237
        %v239 = vlaneseq
        %v240 = vshrl.u32 %v239, 7
        %v241 = vsub.s32 %v238, %v240
        %v242 = vrot.slane %v235, %v241
        %v244 = vadd.f32 %v169, %v242
        %vm245 = vcmask 24576
        %246 = vst.msk [vmem:[#allocation2] sm:$0x1] %vm245, %v244
        // Predicated region
        $region33: #{tpu_custom_call.1} parent=23 // pred_check
          %p247 = pneg %p162
        $region34: #{tpu_custom_call.1} parent=23 // pred_check_branch
          %249 = sbr.rel (%p247) target = $region36
        $region35: #{tpu_custom_call.1} parent=23 // pred_region
          %v250 = vld [vmem:[#allocation2] sm:$0x1]
          %v251 = vmul.f32 %v250, 0.00390625
          %252 = vst.msk [vmem:[%s160] sm:$0x1] %vm245, %v251
        $region36: #{tpu_custom_call.1} parent=23 // pred_fallthru
          _
        %s253 = sand.u32 %s77, 1
        %s254 = scalar_lea.sflag [#allocation5], %s253
        %s255 = sand.u32 %s77, 1
        %s256 = scalar_lea.vmem [#allocation6], %s255
        // Predicated region
        $region37: #{tpu_custom_call.1} parent=23 // pred_check
          %p257 = pneg %p87
        $region38: #{tpu_custom_call.1} parent=23 // pred_check_branch
          %259 = sbr.rel (%p257) target = $region40
        $region39: #{tpu_custom_call.1} parent=23 // pred_region
          %s261 = ssub.s32 16, 16
          %262 = vsyncadd %s254, %s261
          %s263 = sadd.s32 %s24, %s23
          %s264 = smul.addr %s263, 16
          %s265 = scalar_lea.hbm %s1, %s264
          %s267 = sshll.u32 %s256, 4
          %s268 = int_to_ptr.vmem [resolvable:$true] %s267
          %270 = dma.vmem_to_hbm [thread:$0]  %s268, 16, %s265, %s254
        $region40: #{tpu_custom_call.1} parent=23 // pred_fallthru
          _
      $region24: #{tpu_custom_call.1} parent=5 // pred_fallthru
        _
      %p271 = scmp.le.s32.totalorder 2, %s13
      // Predicated region
      $region41: #{tpu_custom_call.1} parent=5 // pred_check
        %p272 = pneg %p271
      $region42: #{tpu_custom_call.1} parent=5 // pred_check_branch
        %274 = sbr.rel (%p272) target = $region44
      $region43: #{tpu_custom_call.1} parent=5 // pred_region
        %s275 = ssub.s32 %s13, 2
        // Predicated region
        $region45: #{tpu_custom_call.1} parent=43 // pred_check
          %p276 = pneg %p93
        $region46: #{tpu_custom_call.1} parent=43 // pred_check_branch
          %278 = sbr.rel (%p276) target = $region48
        $region47: #{tpu_custom_call.1} parent=43 // pred_region
          %s279 = sand.u32 %s78, 1
          %s280 = scalar_lea.sflag [#allocation5], %s279
          %s281 = sand.u32 %s78, 1
          %s282 = scalar_lea.vmem [#allocation6], %s281
          %283 = dma.done %s280, 16
        $region48: #{tpu_custom_call.1} parent=43 // pred_fallthru
          _
      $region44: #{tpu_custom_call.1} parent=5 // pred_fallthru
        _
    $region6: #{tpu_custom_call.1} parent=1 // loop_footer
      %s17 = sadd.s32 1, %s13
    $region7: #{tpu_custom_call.1} parent=1 // loop_footer_branch
      %12 = sbr.rel target = $region3
    $region8: #{tpu_custom_call.1} parent=1 // loop_exit
      _
    %284 = vsyncpa [#allocation4], 1
    %s285 = scalar_lea.sflag [#allocation4], 1
    %286 = vsyncpa %s285, 1
    %287 = vsyncpa [#allocation5], 1
    %s288 = scalar_lea.sflag [#allocation5], 1
    %289 = vsyncpa %s288, 1

</llo_original>
